<compile_context>
chip_gen: v5e
topology: v5e:2x2
jax: 0.10.0
libtpu: 0.0.40
codegen_flags: <defaults>
</compile_context>

<pallas_src>
from functools import partial

import jax
import jax.numpy as jnp
from jax import lax
from jax.experimental import pallas as pl
from jax.experimental.pallas import tpu as pltpu

LANE = 128


def _scaled_mse_kernel(x_ref, t_ref, osq_ref, oabs_ref, sumsq_acc, sumabs_acc,
                       *, sub_rows, full_chunks, rem_chunks):
    i = pl.program_id(0)

    @pl.when(i == 0)
    def _():
        sumsq_acc[...] = jnp.zeros_like(sumsq_acc)
        sumabs_acc[...] = jnp.zeros_like(sumabs_acc)

    def accumulate(n_chunks):
        # Stream the tile in (sub_rows, 128) vreg-sized chunks; keep both
        # accumulators in vregs (loop carry), hit VMEM scratch once at the end.
        def body(r, carry):
            ssq, sab = carry
            off = pl.multiple_of(r * sub_rows, sub_rows)
            d = (x_ref[pl.ds(off, sub_rows), :].astype(jnp.float32)
                 - t_ref[pl.ds(off, sub_rows), :].astype(jnp.float32))
            return ssq + d * d, sab + jnp.abs(d)

        zero = jnp.zeros((sub_rows, LANE), jnp.float32)
        ssq, sab = lax.fori_loop(0, n_chunks, body, (zero, zero),
                                 unroll=min(8, n_chunks))
        sumsq_acc[...] += ssq
        sumabs_acc[...] += sab

    last = pl.num_programs(0) - 1
    if rem_chunks == full_chunks:
        accumulate(full_chunks)
    else:
        # Only the genuinely partial final tile takes the short path; no
        # per-element masking anywhere (row counts are static multiples of 8).
        @pl.when(i < last)
        def _():
            accumulate(full_chunks)

        @pl.when(i == last)
        def _():
            accumulate(rem_chunks)

    @pl.when(i == last)
    def _():
        # Single sublane (XLU) reduction per call; cross-lane sum + eps happen
        # in the tiny wrapper epilogue.
        osq_ref[...] = jnp.sum(sumsq_acc[...], axis=0, keepdims=True)
        oabs_ref[...] = jnp.sum(sumabs_acc[...], axis=0, keepdims=True)


def scaled_mse_loss(x, target, eps=1e-8, block_rows=4096):
    """ScaledMSELoss.forward: sum(diff^2) / (sum(|diff|) + eps), scalar out."""
    assert x.shape == target.shape
    assert block_rows >= 8

    n = x.size
    x_flat = x.reshape(-1)
    t_flat = target.reshape(-1)

    itemsize = x.dtype.itemsize
    # One packed vreg worth of rows: 8 for f32, 16 for bf16/fp16, 32 for int8.
    sub_rows = 8 if itemsize >= 4 else 8 * (4 // itemsize)
    chunk = sub_rows * LANE

    n_main = (n // chunk) * chunk
    n_rem = n - n_main

    sumsq = jnp.float32(0.0)
    sumabs = jnp.float32(0.0)

    if n_main:
        rows = n_main // LANE                       # multiple of sub_rows
        x2 = x_flat[:n_main].reshape(rows, LANE)    # free reshape when aligned
        t2 = t_flat[:n_main].reshape(rows, LANE)

        brows = min(block_rows, rows)
        brows = max(sub_rows, brows - brows % sub_rows)
        num_blocks = pl.cdiv(rows, brows)
        rem_rows = rows - (num_blocks - 1) * brows  # in (0, brows], mult of sub_rows
        full_chunks = brows // sub_rows
        rem_chunks = rem_rows // sub_rows

        # 2 inputs x 2 pipeline buffers per tile + accumulators, with headroom.
        tile_bytes = brows * LANE * itemsize
        vmem_limit = int(min(48 * 2**20, max(16 * 2**20, 4 * tile_bytes + (2 << 20))))

        out_sq, out_abs = pl.pallas_call(
            partial(_scaled_mse_kernel, sub_rows=sub_rows,
                    full_chunks=full_chunks, rem_chunks=rem_chunks),
            out_shape=(
                jax.ShapeDtypeStruct((1, LANE), jnp.float32),
                jax.ShapeDtypeStruct((1, LANE), jnp.float32),
            ),
            grid_spec=pltpu.PrefetchScalarGridSpec(
                num_scalar_prefetch=0,
                grid=(num_blocks,),
                in_specs=[
                    pl.BlockSpec((brows, LANE), lambda i: (i, 0)),
                    pl.BlockSpec((brows, LANE), lambda i: (i, 0)),
                ],
                out_specs=[
                    pl.BlockSpec((1, LANE), lambda i: (0, 0)),
                    pl.BlockSpec((1, LANE), lambda i: (0, 0)),
                ],
                scratch_shapes=[
                    pltpu.VMEM((sub_rows, LANE), jnp.float32),
                    pltpu.VMEM((sub_rows, LANE), jnp.float32),
                ],
            ),
            compiler_params=pltpu.CompilerParams(
                dimension_semantics=("arbitrary",),
                vmem_limit_bytes=vmem_limit,
            ),
        )(x2, t2)

        sumsq = sumsq + jnp.sum(out_sq)
        sumabs = sumabs + jnp.sum(out_abs)

    if n_rem:
        # <1-vreg remainder: trivial plain-JAX epilogue (no pad / full copy).
        d = (x_flat[n_main:].astype(jnp.float32)
             - t_flat[n_main:].astype(jnp.float32))
        sumsq = sumsq + jnp.sum(d * d)
        sumabs = sumabs + jnp.sum(jnp.abs(d))

    return sumsq / (sumabs + jnp.float32(eps))


def _ref_loss(x, target, eps=1e-8):
    d = x.astype(jnp.float32) - target.astype(jnp.float32)
    return jnp.sum(d ** 2) / (jnp.sum(jnp.abs(d)) + jnp.float32(eps))


if __name__ == "__main__":
    key = jax.random.PRNGKey(0)
    k1, k2, k3, k4 = jax.random.split(key, 4)

    # Small NCHW feature-map-like shapes, as in the PyTorch module.
    x = jax.random.normal(k1, (2, 4, 16, 16), dtype=jnp.float32)
    target = jax.random.normal(k2, (2, 4, 16, 16), dtype=jnp.float32)

    loss = jax.block_until_ready(scaled_mse_loss(x, target))
    ref = _ref_loss(x, target)
    assert jnp.allclose(loss, ref, rtol=1e-5, atol=1e-6), (loss, ref)

    # Unaligned shape: exercises the partial-last-block kernel path
    # (block_rows=24 on 32 rows) and the <1024-element JAX epilogue.
    xo = jax.random.normal(k3, (3, 5, 17, 19), dtype=jnp.float32)
    to = jax.random.normal(k4, (3, 5, 17, 19), dtype=jnp.float32)
    loss_o = jax.block_until_ready(scaled_mse_loss(xo, to, block_rows=24))
    ref_o = _ref_loss(xo, to)
    assert jnp.allclose(loss_o, ref_o, rtol=1e-5, atol=1e-6), (loss_o, ref_o)

    print("KERNEL_OK")
</pallas_src>

<mosaic_0001>
module attributes {stable_mosaic.version = 11 : i64} {
  func.func @_scaled_mse_kernel(%arg0: i32, %arg1: memref<16x128xf32, #tpu.memory_space<vmem>>, %arg2: memref<16x128xf32, #tpu.memory_space<vmem>>, %arg3: memref<1x128xf32, #tpu.memory_space<vmem>>, %arg4: memref<1x128xf32, #tpu.memory_space<vmem>>, %arg5: memref<8x128xf32, #tpu.memory_space<vmem>>, %arg6: memref<8x128xf32, #tpu.memory_space<vmem>>) attributes {dimension_semantics = [#tpu.dimension_semantics<arbitrary>], iteration_bounds = array<i64: 1>, scalar_prefetch = 0 : i64, scratch_operands = 2 : i64, tpu.core_type = #tpu.core_type<tc>, window_params = [{transform_indices = @transform_0, window_bounds = array<i64: 16, 128>}, {transform_indices = @transform_1, window_bounds = array<i64: 16, 128>}, {pipeline_mode = #tpu.pipeline_mode<synchronous>, transform_indices = @transform_2, window_bounds = array<i64: 1, 128>}, {pipeline_mode = #tpu.pipeline_mode<synchronous>, transform_indices = @transform_3, window_bounds = array<i64: 1, 128>}]} {
    %c0_i32 = arith.constant 0 : i32
    %0 = arith.cmpi eq, %arg0, %c0_i32 : i32
    %1 = arith.extui %0 : i1 to i32
    %c0_i32_0 = arith.constant 0 : i32
    %2 = arith.cmpi ne, %1, %c0_i32_0 : i32
    scf.if %2 {
      %cst_16 = arith.constant 0.000000e+00 : f32
      %35 = vector.broadcast %cst_16 : f32 to vector<8x128xf32>
      %c0_17 = arith.constant 0 : index
      %c0_18 = arith.constant 0 : index
      %36 = vector.load %arg5[%c0_17, %c0_18] : memref<8x128xf32, #tpu.memory_space<vmem>>, vector<8x128xf32>
      tpu.vector_store %arg5[%c0_17, %c0_18], %35 {strides = array<i32>} : memref<8x128xf32, #tpu.memory_space<vmem>>, vector<8x128xf32>,
      %cst_19 = arith.constant 0.000000e+00 : f32
      %37 = vector.broadcast %cst_19 : f32 to vector<8x128xf32>
      %c0_20 = arith.constant 0 : index
      %c0_21 = arith.constant 0 : index
      %38 = vector.load %arg6[%c0_20, %c0_21] : memref<8x128xf32, #tpu.memory_space<vmem>>, vector<8x128xf32>
      tpu.vector_store %arg6[%c0_20, %c0_21], %37 {strides = array<i32>} : memref<8x128xf32, #tpu.memory_space<vmem>>, vector<8x128xf32>,
    } else {
    }
    %cst = arith.constant 0.000000e+00 : f32
    %3 = vector.broadcast %cst : f32 to vector<8x128xf32>
    %c0_i32_1 = arith.constant 0 : i32
    %c8_i32 = arith.constant 8 : i32
    %4 = arith.muli %c0_i32_1, %c8_i32 : i32
    %5 = tpu.assume_multiple %4, 8 : i32
    %6 = arith.index_cast %5 : i32 to index
    %c0 = arith.constant 0 : index
    %7 = vector.load %arg1[%6, %c0] : memref<16x128xf32, #tpu.memory_space<vmem>>, vector<8x128xf32>
    %8 = arith.index_cast %5 : i32 to index
    %c0_2 = arith.constant 0 : index
    %9 = vector.load %arg2[%8, %c0_2] : memref<16x128xf32, #tpu.memory_space<vmem>>, vector<8x128xf32>
    %10 = arith.subf %7, %9 : vector<8x128xf32>
    %11 = arith.mulf %10, %10 : vector<8x128xf32>
    %12 = arith.addf %3, %11 : vector<8x128xf32>
    %13 = math.absf %10 : vector<8x128xf32>
    %14 = arith.addf %3, %13 : vector<8x128xf32>
    %c1_i32 = arith.constant 1 : i32
    %c8_i32_3 = arith.constant 8 : i32
    %15 = arith.muli %c1_i32, %c8_i32_3 : i32
    %16 = tpu.assume_multiple %15, 8 : i32
    %17 = arith.index_cast %16 : i32 to index
    %c0_4 = arith.constant 0 : index
    %18 = vector.load %arg1[%17, %c0_4] : memref<16x128xf32, #tpu.memory_space<vmem>>, vector<8x128xf32>
    %19 = arith.index_cast %16 : i32 to index
    %c0_5 = arith.constant 0 : index
    %20 = vector.load %arg2[%19, %c0_5] : memref<16x128xf32, #tpu.memory_space<vmem>>, vector<8x128xf32>
    %21 = arith.subf %18, %20 : vector<8x128xf32>
    %22 = arith.mulf %21, %21 : vector<8x128xf32>
    %23 = arith.addf %12, %22 : vector<8x128xf32>
    %24 = math.absf %21 : vector<8x128xf32>
    %25 = arith.addf %14, %24 : vector<8x128xf32>
    %c2_i32 = arith.constant 2 : i32
    %c0_6 = arith.constant 0 : index
    %c0_7 = arith.constant 0 : index
    %26 = vector.load %arg5[%c0_6, %c0_7] : memref<8x128xf32, #tpu.memory_space<vmem>>, vector<8x128xf32>
    %27 = arith.addf %26, %23 : vector<8x128xf32>
    %c0_8 = arith.constant 0 : index
    %c0_9 = arith.constant 0 : index
    %28 = vector.load %arg5[%c0_8, %c0_9] : memref<8x128xf32, #tpu.memory_space<vmem>>, vector<8x128xf32>
    tpu.vector_store %arg5[%c0_8, %c0_9], %27 {strides = array<i32>} : memref<8x128xf32, #tpu.memory_space<vmem>>, vector<8x128xf32>,
    %c0_10 = arith.constant 0 : index
    %c0_11 = arith.constant 0 : index
    %29 = vector.load %arg6[%c0_10, %c0_11] : memref<8x128xf32, #tpu.memory_space<vmem>>, vector<8x128xf32>
    %30 = arith.addf %29, %25 : vector<8x128xf32>
    %c0_12 = arith.constant 0 : index
    %c0_13 = arith.constant 0 : index
    %31 = vector.load %arg6[%c0_12, %c0_13] : memref<8x128xf32, #tpu.memory_space<vmem>>, vector<8x128xf32>
    tpu.vector_store %arg6[%c0_12, %c0_13], %30 {strides = array<i32>} : memref<8x128xf32, #tpu.memory_space<vmem>>, vector<8x128xf32>,
    %c0_i32_14 = arith.constant 0 : i32
    %32 = arith.cmpi eq, %arg0, %c0_i32_14 : i32
    %33 = arith.extui %32 : i1 to i32
    %c0_i32_15 = arith.constant 0 : i32
    %34 = arith.cmpi ne, %33, %c0_i32_15 : i32
    scf.if %34 {
      %c0_16 = arith.constant 0 : index
      %c0_17 = arith.constant 0 : index
      %35 = vector.load %arg5[%c0_16, %c0_17] : memref<8x128xf32, #tpu.memory_space<vmem>>, vector<8x128xf32>
      %cst_18 = arith.constant dense<0.000000e+00> : vector<128xf32>
      %36 = vector.multi_reduction <add>, %35, %cst_18 [0] : vector<8x128xf32> to vector<128xf32>
      %37 = vector.shape_cast %36 : vector<128xf32> to vector<1x128xf32>
      %c0_19 = arith.constant 0 : index
      %c0_20 = arith.constant 0 : index
      %38 = vector.load %arg3[%c0_19, %c0_20] : memref<1x128xf32, #tpu.memory_space<vmem>>, vector<1x128xf32>
      tpu.vector_store %arg3[%c0_19, %c0_20], %37 {strides = array<i32>} : memref<1x128xf32, #tpu.memory_space<vmem>>, vector<1x128xf32>,
      %c0_21 = arith.constant 0 : index
      %c0_22 = arith.constant 0 : index
      %39 = vector.load %arg6[%c0_21, %c0_22] : memref<8x128xf32, #tpu.memory_space<vmem>>, vector<8x128xf32>
      %cst_23 = arith.constant dense<0.000000e+00> : vector<128xf32>
      %40 = vector.multi_reduction <add>, %39, %cst_23 [0] : vector<8x128xf32> to vector<128xf32>
      %41 = vector.shape_cast %40 : vector<128xf32> to vector<1x128xf32>
      %c0_24 = arith.constant 0 : index
      %c0_25 = arith.constant 0 : index
      %42 = vector.load %arg4[%c0_24, %c0_25] : memref<1x128xf32, #tpu.memory_space<vmem>>, vector<1x128xf32>
      tpu.vector_store %arg4[%c0_24, %c0_25], %41 {strides = array<i32>} : memref<1x128xf32, #tpu.memory_space<vmem>>, vector<1x128xf32>,
    } else {
    }
    return
  }
  func.func @transform_0(%arg0: i32) -> (i32, i32) {
    %c0_i32 = arith.constant 0 : i32
    %c0_i32_0 = arith.constant 0 : i32
    return %arg0, %c0_i32 : i32, i32
  }
  func.func @transform_1(%arg0: i32) -> (i32, i32) {
    %c0_i32 = arith.constant 0 : i32
    %c0_i32_0 = arith.constant 0 : i32
    return %arg0, %c0_i32 : i32, i32
  }
  func.func @transform_2(%arg0: i32) -> (i32, i32) {
    %c0_i32 = arith.constant 0 : i32
    %c0_i32_0 = arith.constant 0 : i32
    %c0_i32_1 = arith.constant 0 : i32
    return %c0_i32, %c0_i32_0 : i32, i32
  }
  func.func @transform_3(%arg0: i32) -> (i32, i32) {
    %c0_i32 = arith.constant 0 : i32
    %c0_i32_0 = arith.constant 0 : i32
    %c0_i32_1 = arith.constant 0 : i32
    return %c0_i32, %c0_i32_0 : i32, i32
  }
}

</mosaic_0001>

<llo_original>
// kernel: tpu_custom_call.1
$region0: #{tpu_custom_call.1}
  #allocation0 [shape = 'u32[]', space=smem, size = 0x4, offset = 0x4, fixed_abs, tag = 'smem constant byte address 0x4 - core index']
  #allocation1 [shape = 'u32[72,128]{1,0:T(1,128)}', space=vmem, size = 0x9000, scoped, tag = 'internal scratch']
  #allocation2 [shape = 'f32[8,128]{1,0:T(8,128)}', space=vmem, size = 0x1000, scoped, tag = 'scratch operand']
  #allocation3 [shape = 'f32[8,128]{1,0:T(8,128)}', space=vmem, size = 0x1000, scoped, tag = 'scratch operand']
  %s0 = inlined_call_operand.hbm [shape: f32[16,128], index: 0, kind: input, shape index: {}]
  %s1 = inlined_call_operand.hbm [shape: f32[16,128], index: 1, kind: input, shape index: {}]
  %s2 = inlined_call_operand.hbm [shape: f32[1,128], index: 2, kind: output, shape index: {0}]
  %s3 = inlined_call_operand.hbm [shape: f32[1,128], index: 3, kind: output, shape index: {1}]
  %4 = xla_tuple %s2, %s3
  %s5 = sld [smem:[#allocation0]]
  $region42: #{tpu_custom_call.1} parent=0
    _
  %s7 = ssub.s32 1, %s5
  %s8 = scalar_select 0, %s7, %s5
  $region1: #{tpu_custom_call.1} parent=0
    #allocation4 [shape = 'u8[8192]{0}', space=vmem, size = 0x2000, scoped, tag = 'input window, operand 0, single buffered']
    #allocation5 [shape = 's32[1]{0}', space=sflag, size = 0x4, scoped, tag = 'scoped memory for tpu_custom_call.1']
    #allocation6 [shape = 's32[1]{0}', space=sflag, size = 0x4, scoped, tag = 'scoped memory for tpu_custom_call.1']
    #allocation7 [shape = 'u8[8192]{0}', space=vmem, size = 0x2000, scoped, tag = 'input window, operand 1, single buffered']
    #allocation8 [shape = 's32[1]{0}', space=sflag, size = 0x4, scoped, tag = 'scoped memory for tpu_custom_call.1']
    #allocation9 [shape = 'u8[512]{0}', space=vmem, size = 0x400, scoped, tag = 'output window, operand 0, single buffered']
    #allocation10 [shape = 'u8[512]{0}', space=vmem, size = 0x400, scoped, tag = 'output window, operand 1, single buffered']
    #allocation11 [shape = 's32[1]{0}', space=sflag, size = 0x4, scoped, tag = 'scoped memory for tpu_custom_call.1']
    %9 = vsyncpa [#allocation5], 0
    %10 = vsyncpa [#allocation8], 0
    %11 = vsyncpa [#allocation6], 0
    %12 = vsyncpa [#allocation11], 0
    // Predicated region
    $region2: #{tpu_custom_call.1} parent=1 // pred_check
      _
    $region3: #{tpu_custom_call.1} parent=1 // pred_check_branch
      %14 = sbr.rel (0) target = $region5
    $region4: #{tpu_custom_call.1} parent=1 // pred_region
      %16 = vsyncadd [#allocation5], 0
      %s17 = sshll.u32 %s0, 4
      %s18 = int_to_ptr.hbm [resolvable:$true] %s17
      %s19 = sshll.u32 [#allocation4], 4
      %s20 = int_to_ptr.vmem [resolvable:$true] %s19
      %25 = dma.hbm_to_vmem [thread:$0]  %s18, 256, %s20, [#allocation5], 128, 128, 8
    $region5: #{tpu_custom_call.1} parent=1 // pred_fallthru
      _
    // Predicated region
    $region6: #{tpu_custom_call.1} parent=1 // pred_check
      _
    $region7: #{tpu_custom_call.1} parent=1 // pred_check_branch
      %27 = sbr.rel (0) target = $region9
    $region8: #{tpu_custom_call.1} parent=1 // pred_region
      %29 = vsyncadd [#allocation8], 0
      %s30 = sshll.u32 %s1, 4
      %s31 = int_to_ptr.hbm [resolvable:$true] %s30
      %s32 = sshll.u32 [#allocation7], 4
      %s33 = int_to_ptr.vmem [resolvable:$true] %s32
      %38 = dma.hbm_to_vmem [thread:$0]  %s31, 256, %s33, [#allocation8], 128, 128, 8
    $region9: #{tpu_custom_call.1} parent=1 // pred_fallthru
      _
    // Predicated region
    $region10: #{tpu_custom_call.1} parent=1 // pred_check
      _
    $region11: #{tpu_custom_call.1} parent=1 // pred_check_branch
      %40 = sbr.rel (0) target = $region13
    $region12: #{tpu_custom_call.1} parent=1 // pred_region
      %42 = dma.done [#allocation5], 256
    $region13: #{tpu_custom_call.1} parent=1 // pred_fallthru
      _
    // Predicated region
    $region14: #{tpu_custom_call.1} parent=1 // pred_check
      _
    $region15: #{tpu_custom_call.1} parent=1 // pred_check_branch
      %44 = sbr.rel (0) target = $region17
    $region16: #{tpu_custom_call.1} parent=1 // pred_region
      %46 = dma.done [#allocation8], 256
    $region17: #{tpu_custom_call.1} parent=1 // pred_fallthru
      _
    %p47 = scmp.eq.s32.totalorder 0, 0
    // Predicated region
    $region18: #{tpu_custom_call.1} parent=1 // pred_check
      %p48 = pneg %p47
    $region19: #{tpu_custom_call.1} parent=1 // pred_check_branch
      %50 = sbr.rel (%p48) target = $region21
    $region20: #{tpu_custom_call.1} parent=1 // pred_region
      %51 = vst [vmem:[#allocation2] sm:$0xff] 0.0
      %52 = vst [vmem:[#allocation3] sm:$0xff] 0.0
    $region21: #{tpu_custom_call.1} parent=1 // pred_fallthru
      _
    %v53 = vld [vmem:[#allocation4] sm:$0xff]
    %v54 = vld [vmem:[#allocation7] sm:$0xff]
    %v55 = vsub.f32 %v53, %v54
    %v56 = vmul.f32 %v55, %v55
    %v57 = vadd.f32 %v56, 0.0
    %v58 = vand.u32 2147483647, %v55
    %v59 = vadd.f32 %v58, 0.0
    %s60 = scalar_lea.vmem [#allocation4], 8
    %v61 = vld [vmem:[%s60] sm:$0xff]
    %s62 = scalar_lea.vmem [#allocation7], 8
    %v63 = vld [vmem:[%s62] sm:$0xff]
    %v64 = vsub.f32 %v61, %v63
    %v65 = vmul.f32 %v64, %v64
    %v66 = vadd.f32 %v57, %v65
    %v67 = vand.u32 2147483647, %v64
    %v68 = vadd.f32 %v59, %v67
    %v69 = vld [vmem:[#allocation2] sm:$0xff]
    %v70 = vadd.f32 %v69, %v66
    %71 = vst [vmem:[#allocation2] sm:$0xff] %v70
    %v72 = vld [vmem:[#allocation3] sm:$0xff]
    %v73 = vadd.f32 %v72, %v68
    %74 = vst [vmem:[#allocation3] sm:$0xff] %v73
    // Predicated region
    $region22: #{tpu_custom_call.1} parent=1 // pred_check
      %p75 = pneg %p47
    $region23: #{tpu_custom_call.1} parent=1 // pred_check_branch
      %77 = sbr.rel (%p75) target = $region25
    $region24: #{tpu_custom_call.1} parent=1 // pred_region
      %v78 = vld [vmem:[#allocation2] sm:$0xff]
      %v79 = vrot.slane %v78, 4
      %v80 = vadd.f32 %v78, %v79
      %v81 = vrot.slane %v80, 2
      %v82 = vadd.f32 %v80, %v81
      %v83 = vrot.slane %v82, 1
      %v84 = vadd.f32 %v82, %v83
      %85 = vst [vmem:[#allocation9] sm:$0x1] %v84
      %v86 = vld [vmem:[#allocation3] sm:$0xff]
      %v87 = vrot.slane %v86, 4
      %v88 = vadd.f32 %v86, %v87
      %v89 = vrot.slane %v88, 2
      %v90 = vadd.f32 %v88, %v89
      %v91 = vrot.slane %v90, 1
      %v92 = vadd.f32 %v90, %v91
      %93 = vst [vmem:[#allocation10] sm:$0x1] %v92
    $region25: #{tpu_custom_call.1} parent=1 // pred_fallthru
      _
    // Predicated region
    $region26: #{tpu_custom_call.1} parent=1 // pred_check
      _
    $region27: #{tpu_custom_call.1} parent=1 // pred_check_branch
      %95 = sbr.rel (0) target = $region29
    $region28: #{tpu_custom_call.1} parent=1 // pred_region
      %97 = vsyncadd [#allocation6], 0
      %s99 = sshll.u32 [#allocation9], 4
      %s100 = int_to_ptr.vmem [resolvable:$true] %s99
      %s101 = sshll.u32 %s2, 4
      %s102 = int_to_ptr.hbm [resolvable:$true] %s101
      %104 = dma.vmem_to_hbm [thread:$0]  %s100, 16, %s102, [#allocation6]
    $region29: #{tpu_custom_call.1} parent=1 // pred_fallthru
      _
    // Predicated region
    $region30: #{tpu_custom_call.1} parent=1 // pred_check
      _
    $region31: #{tpu_custom_call.1} parent=1 // pred_check_branch
      %106 = sbr.rel (0) target = $region33
    $region32: #{tpu_custom_call.1} parent=1 // pred_region
      %108 = vsyncadd [#allocation11], 0
      %s110 = sshll.u32 [#allocation10], 4
      %s111 = int_to_ptr.vmem [resolvable:$true] %s110
      %s112 = sshll.u32 %s3, 4
      %s113 = int_to_ptr.hbm [resolvable:$true] %s112
      %115 = dma.vmem_to_hbm [thread:$0]  %s111, 16, %s113, [#allocation11]
    $region33: #{tpu_custom_call.1} parent=1 // pred_fallthru
      _
    // Predicated region
    $region34: #{tpu_custom_call.1} parent=1 // pred_check
      _
    $region35: #{tpu_custom_call.1} parent=1 // pred_check_branch
      %117 = sbr.rel (0) target = $region37
    $region36: #{tpu_custom_call.1} parent=1 // pred_region
      %119 = dma.done [#allocation6], 16
    $region37: #{tpu_custom_call.1} parent=1 // pred_fallthru
      _
    // Predicated region
    $region38: #{tpu_custom_call.1} parent=1 // pred_check
      _
    $region39: #{tpu_custom_call.1} parent=1 // pred_check_branch
      %121 = sbr.rel (0) target = $region41
    $region40: #{tpu_custom_call.1} parent=1 // pred_region
      %123 = dma.done [#allocation11], 16
    $region41: #{tpu_custom_call.1} parent=1 // pred_fallthru
      _
    %124 = vsyncpa [#allocation5], 1
    %125 = vsyncpa [#allocation8], 1
    %126 = vsyncpa [#allocation6], 1
    %127 = vsyncpa [#allocation11], 1

</llo_original>
